<compile_context>
chip_gen: v5e
topology: v5e:2x2
jax: 0.10.0
libtpu: 0.0.40
codegen_flags: <defaults>
</compile_context>

<pallas_src>
import functools

import jax
import jax.numpy as jnp
from jax.experimental import pallas as pl
from jax.experimental.pallas import tpu as pltpu


# ---------------------------------------------------------------------------
# Kernel 1: grid reduction over spatial tiles -> global avg pool, then (on the
# last grid step) 1x1x1 conv (matmul), training-mode BatchNorm3d and sigmoid.
# ---------------------------------------------------------------------------
def _pool_conv_bn_sig_kernel(x_ref, w_ref, b_ref, g_ref, beta_ref,
                             att_ref, acc_ref, *, inv_s, eps):
    s = pl.program_id(0)

    @pl.when(s == 0)
    def _():
        acc_ref[...] = jnp.zeros_like(acc_ref)

    # partial spatial sum of this tile: (N, C_in, ts) -> (N, C_in), f32 accum
    acc_ref[...] += jnp.sum(x_ref[...].astype(jnp.float32), axis=-1)

    @pl.when(s == pl.num_programs(0) - 1)
    def _():
        pooled = acc_ref[...] * inv_s                       # (N, C_in) == avg pool
        # 1x1x1 Conv3d on a 1^3 volume == dense matmul + bias
        y = jnp.dot(pooled, w_ref[...].T,
                    preferred_element_type=jnp.float32) + b_ref[...]   # (N, C_out)
        # BatchNorm3d (training mode): biased stats over the batch axis
        mu = jnp.mean(y, axis=0, keepdims=True)
        var = jnp.mean((y - mu) ** 2, axis=0, keepdims=True)
        y_hat = (y - mu) * jax.lax.rsqrt(var + eps)
        att_ref[...] = jax.nn.sigmoid(y_hat * g_ref[...] + beta_ref[...])


# ---------------------------------------------------------------------------
# Kernel 2: broadcast multiply  out[r, s] = x[r, s] * att[r]   (r = n*C + c)
# ---------------------------------------------------------------------------
def _broadcast_mul_kernel(x_ref, att_ref, o_ref):
    o_ref[...] = (x_ref[...].astype(jnp.float32) * att_ref[...]).astype(o_ref.dtype)


def _round_up(v, m):
    return (v + m - 1) // m * m


def attention_refinement_3d(x, conv_w, conv_b, bn_gamma, bn_beta,
                            pool_size=1, eps=1e-5,
                            vmem_budget_bytes=24 << 20,
                            donate_x=False):
    """x: (N, C_in, D, H, W) in f32 or bf16, NCDHW (PyTorch convention).

    donate_x: alias the multiply output onto the x buffer (only safe if the
    caller does not need x afterwards).
    """
    assert pool_size == 1, "only global-pool (pool_size=1) path implemented"
    N, C_in, D, H, W = x.shape
    C_out = conv_w.shape[0]
    assert C_out == C_in, "torch.mul broadcast requires conv_out == conv_in"

    S = D * H * W
    R = N * C_in
    in_dtype = x.dtype
    in_bytes = jnp.dtype(in_dtype).itemsize
    out_bytes = in_bytes

    # ---- spatial tile width: largest 128-multiple fitting the VMEM budget ----
    # Double-buffered working sets (rows padded to the worst-case sublane tile):
    #   multiply pass : 2 * rows_mul * ts * (in + out) bytes
    #   reduction pass: 2 * rows_red * ts * in bytes
    rows_mul = _round_up(R, 16)
    rows_red = N * _round_up(C_in, 16)
    per_col = 2 * max(rows_mul * (in_bytes + out_bytes), rows_red * in_bytes)
    ts = max(128, (vmem_budget_bytes // per_col) // 128 * 128)
    ts = min(ts, _round_up(S, 128))

    S_pad = _round_up(S, ts)
    n_tiles = S_pad // ts

    # Flatten spatial dims; zero-pad S up to a tile multiple (kept pipelined,
    # never a single giant block). Padding is harmless: inv_s uses the true S
    # and padded output columns are sliced off.
    x2 = x.reshape(R, S)
    if S_pad != S:
        x2 = jnp.pad(x2, ((0, 0), (0, S_pad - S)))
    x3 = x2.reshape(N, C_in, S_pad)

    w = conv_w.reshape(C_out, C_in).astype(jnp.float32)    # (Cout,Cin,1,1,1)->(Cout,Cin)
    b = conv_b.reshape(1, C_out).astype(jnp.float32)
    g = bn_gamma.reshape(1, C_out).astype(jnp.float32)
    be = bn_beta.reshape(1, C_out).astype(jnp.float32)

    x_bytes = R * S_pad * in_bytes
    vmem_limit = 32 * 1024 * 1024

    # ---- pass 1: global avg pool + 1x1x1 conv + BN(train) + sigmoid ----------
    att = pl.pallas_call(
        functools.partial(_pool_conv_bn_sig_kernel, inv_s=1.0 / S, eps=eps),
        out_shape=jax.ShapeDtypeStruct((N, C_out), jnp.float32),
        grid_spec=pltpu.PrefetchScalarGridSpec(
            num_scalar_prefetch=0,
            grid=(n_tiles,),
            in_specs=[
                pl.BlockSpec((N, C_in, ts), lambda s: (0, 0, s)),
                pl.BlockSpec((C_out, C_in), lambda s: (0, 0)),
                pl.BlockSpec((1, C_out), lambda s: (0, 0)),
                pl.BlockSpec((1, C_out), lambda s: (0, 0)),
                pl.BlockSpec((1, C_out), lambda s: (0, 0)),
            ],
            out_specs=pl.BlockSpec((N, C_out), lambda s: (0, 0)),
            scratch_shapes=[pltpu.VMEM((N, C_in), jnp.float32)],
        ),
        compiler_params=pltpu.CompilerParams(
            dimension_semantics=("arbitrary",),
            vmem_limit_bytes=vmem_limit),
        cost_estimate=pl.CostEstimate(
            flops=R * S_pad + 2 * N * C_in * C_out,
            transcendentals=N * C_out,
            bytes_accessed=x_bytes + (C_out * C_in + 3 * C_out + N * C_out) * 4),
    )(x3, w, b, g, be)

    att2 = att.reshape(R, 1)

    # ---- pass 2: sublane/lane-dense broadcast multiply over the full volume --
    out = pl.pallas_call(
        _broadcast_mul_kernel,
        out_shape=jax.ShapeDtypeStruct((R, S_pad), in_dtype),
        grid_spec=pltpu.PrefetchScalarGridSpec(
            num_scalar_prefetch=0,
            grid=(n_tiles,),
            in_specs=[
                pl.BlockSpec((R, ts), lambda s: (0, s)),
                pl.BlockSpec((R, 1), lambda s: (0, 0)),
            ],
            out_specs=pl.BlockSpec((R, ts), lambda s: (0, s)),
        ),
        compiler_params=pltpu.CompilerParams(
            dimension_semantics=("parallel",),
            vmem_limit_bytes=vmem_limit),
        cost_estimate=pl.CostEstimate(
            flops=R * S_pad,
            transcendentals=0,
            bytes_accessed=2 * x_bytes + R * 4),
        input_output_aliases=({0: 0} if donate_x else {}),
    )(x2, att2)

    if S_pad != S:
        out = out[:, :S]
    return out.reshape(N, C_in, D, H, W)


def _reference(x, conv_w, conv_b, bn_gamma, bn_beta, eps=1e-5):
    """Plain-JAX replica of the PyTorch forward (pool_size=1, BN train mode)."""
    pooled = x.mean(axis=(2, 3, 4))                          # (N, C)
    y = pooled @ conv_w.reshape(conv_w.shape[0], -1).T + conv_b
    mu = y.mean(axis=0)
    var = ((y - mu) ** 2).mean(axis=0)
    att = jax.nn.sigmoid((y - mu) / jnp.sqrt(var + eps) * bn_gamma + bn_beta)
    return x * att[:, :, None, None, None]


if __name__ == "__main__":
    key = jax.random.PRNGKey(0)
    k_x, k_w, k_b, k_g, k_be, k_x2 = jax.random.split(key, 6)

    N, C_in, C_out = 2, 4, 4
    D = H = W = 8                                    # S = 512 (tile-aligned path)

    x = jax.random.normal(k_x, (N, C_in, D, H, W), dtype=jnp.float32)
    conv_w = jax.random.normal(k_w, (C_out, C_in, 1, 1, 1), dtype=jnp.float32) * 0.5
    conv_b = jax.random.normal(k_b, (C_out,), dtype=jnp.float32) * 0.1
    bn_gamma = 1.0 + 0.1 * jax.random.normal(k_g, (C_out,), dtype=jnp.float32)
    bn_beta = 0.1 * jax.random.normal(k_be, (C_out,), dtype=jnp.float32)

    # f32 path
    out = jax.block_until_ready(
        attention_refinement_3d(x, conv_w, conv_b, bn_gamma, bn_beta))
    ref = _reference(x, conv_w, conv_b, bn_gamma, bn_beta)
    assert out.shape == (N, C_in, D, H, W)
    assert jnp.allclose(out, ref, atol=1e-5, rtol=1e-5), "f32 mismatch vs reference"

    # non-128-aligned spatial size -> exercises the zero-padding path
    D2, H2, W2 = 5, 6, 7                             # S = 210
    x_odd = jax.random.normal(k_x2, (N, C_in, D2, H2, W2), dtype=jnp.float32)
    out_odd = jax.block_until_ready(
        attention_refinement_3d(x_odd, conv_w, conv_b, bn_gamma, bn_beta))
    ref_odd = _reference(x_odd, conv_w, conv_b, bn_gamma, bn_beta)
    assert jnp.allclose(out_odd, ref_odd, atol=1e-5, rtol=1e-5), "padded-S mismatch"

    # bf16 storage path (x stays bf16 in HBM; f32 compute; bf16 output)
    x_bf16 = x.astype(jnp.bfloat16)
    out_bf16 = jax.block_until_ready(
        attention_refinement_3d(x_bf16, conv_w, conv_b, bn_gamma, bn_beta))
    ref_bf16 = _reference(x_bf16.astype(jnp.float32), conv_w, conv_b, bn_gamma, bn_beta)
    assert out_bf16.dtype == jnp.bfloat16
    assert jnp.allclose(out_bf16.astype(jnp.float32), ref_bf16,
                        atol=3e-2, rtol=3e-2), "bf16 mismatch vs reference"

    print("KERNEL_OK")
</pallas_src>

<mosaic_0001>
module attributes {stable_mosaic.version = 11 : i64} {
  func.func @_pool_conv_bn_sig_kernel(%arg0: i32, %arg1: memref<2x4x512xf32, #tpu.memory_space<vmem>>, %arg2: memref<4x4xf32, #tpu.memory_space<vmem>>, %arg3: memref<1x4xf32, #tpu.memory_space<vmem>>, %arg4: memref<1x4xf32, #tpu.memory_space<vmem>>, %arg5: memref<1x4xf32, #tpu.memory_space<vmem>>, %arg6: memref<2x4xf32, #tpu.memory_space<vmem>>, %arg7: memref<2x4xf32, #tpu.memory_space<vmem>>) attributes {dimension_semantics = [#tpu.dimension_semantics<arbitrary>], iteration_bounds = array<i64: 1>, scalar_prefetch = 0 : i64, scratch_operands = 1 : i64, tpu.core_type = #tpu.core_type<tc>, window_params = [{transform_indices = @transform_0, window_bounds = array<i64: 2, 4, 512>}, {pipeline_mode = #tpu.pipeline_mode<synchronous>, transform_indices = @transform_1, window_bounds = array<i64: 4, 4>}, {pipeline_mode = #tpu.pipeline_mode<synchronous>, transform_indices = @transform_2, window_bounds = array<i64: 1, 4>}, {pipeline_mode = #tpu.pipeline_mode<synchronous>, transform_indices = @transform_3, window_bounds = array<i64: 1, 4>}, {pipeline_mode = #tpu.pipeline_mode<synchronous>, transform_indices = @transform_4, window_bounds = array<i64: 1, 4>}, {pipeline_mode = #tpu.pipeline_mode<synchronous>, transform_indices = @transform_5, window_bounds = array<i64: 2, 4>}]} {
    %c0_i32 = arith.constant 0 : i32
    %0 = arith.cmpi eq, %arg0, %c0_i32 : i32
    %1 = arith.extui %0 : i1 to i32
    %c0_i32_0 = arith.constant 0 : i32
    %2 = arith.cmpi ne, %1, %c0_i32_0 : i32
    scf.if %2 {
      %cst_9 = arith.constant 0.000000e+00 : f32
      %11 = vector.broadcast %cst_9 : f32 to vector<2x4xf32>
      %c0_10 = arith.constant 0 : index
      %c0_11 = arith.constant 0 : index
      %12 = vector.load %arg7[%c0_10, %c0_11] : memref<2x4xf32, #tpu.memory_space<vmem>>, vector<2x4xf32>
      tpu.vector_store %arg7[%c0_10, %c0_11], %11 {strides = array<i32>} : memref<2x4xf32, #tpu.memory_space<vmem>>, vector<2x4xf32>,
    } else {
    }
    %c0 = arith.constant 0 : index
    %c0_1 = arith.constant 0 : index
    %3 = vector.load %arg7[%c0, %c0_1] : memref<2x4xf32, #tpu.memory_space<vmem>>, vector<2x4xf32>
    %c0_2 = arith.constant 0 : index
    %c0_3 = arith.constant 0 : index
    %c0_4 = arith.constant 0 : index
    %4 = vector.load %arg1[%c0_2, %c0_3, %c0_4] : memref<2x4x512xf32, #tpu.memory_space<vmem>>, vector<2x4x512xf32>
    %cst = arith.constant dense<0.000000e+00> : vector<2x4xf32>
    %5 = vector.multi_reduction <add>, %4, %cst [2] : vector<2x4x512xf32> to vector<2x4xf32>
    %6 = arith.addf %3, %5 : vector<2x4xf32>
    %c0_5 = arith.constant 0 : index
    %c0_6 = arith.constant 0 : index
    %7 = vector.load %arg7[%c0_5, %c0_6] : memref<2x4xf32, #tpu.memory_space<vmem>>, vector<2x4xf32>
    tpu.vector_store %arg7[%c0_5, %c0_6], %6 {strides = array<i32>} : memref<2x4xf32, #tpu.memory_space<vmem>>, vector<2x4xf32>,
    %c0_i32_7 = arith.constant 0 : i32
    %8 = arith.cmpi eq, %arg0, %c0_i32_7 : i32
    %9 = arith.extui %8 : i1 to i32
    %c0_i32_8 = arith.constant 0 : i32
    %10 = arith.cmpi ne, %9, %c0_i32_8 : i32
    scf.if %10 {
      %c0_9 = arith.constant 0 : index
      %c0_10 = arith.constant 0 : index
      %11 = vector.load %arg7[%c0_9, %c0_10] : memref<2x4xf32, #tpu.memory_space<vmem>>, vector<2x4xf32>
      %cst_11 = arith.constant 0.001953125 : f32
      %12 = vector.broadcast %cst_11 : f32 to vector<2x4xf32>
      %13 = arith.mulf %11, %12 : vector<2x4xf32>
      %c0_12 = arith.constant 0 : index
      %c0_13 = arith.constant 0 : index
      %14 = vector.load %arg2[%c0_12, %c0_13] : memref<4x4xf32, #tpu.memory_space<vmem>>, vector<4x4xf32>
      %15 = tpu.transpose %14, [1, 0] : vector<4x4xf32> -> vector<4x4xf32>
      %cst_14 = arith.constant dense<0.000000e+00> : vector<2x4xf32>
      %16 = tpu.matmul %13, %15, %cst_14 {dimension_numbers = #tpu.dot_dimension_numbers<[1], [0], [0], [1], [0, 0, 1, 1], [], []>} : vector<2x4xf32>, vector<4x4xf32>, vector<2x4xf32> -> vector<2x4xf32>
      %c0_15 = arith.constant 0 : index
      %c0_16 = arith.constant 0 : index
      %17 = vector.load %arg3[%c0_15, %c0_16] : memref<1x4xf32, #tpu.memory_space<vmem>>, vector<1x4xf32>
      %18 = vector.broadcast %17 : vector<1x4xf32> to vector<2x4xf32>
      %19 = arith.addf %16, %18 : vector<2x4xf32>
      %cst_17 = arith.constant dense<0.000000e+00> : vector<4xf32>
      %20 = vector.multi_reduction <add>, %19, %cst_17 [0] : vector<2x4xf32> to vector<4xf32>
      %21 = vector.shape_cast %20 : vector<4xf32> to vector<1x4xf32>
      %cst_18 = arith.constant 2.000000e+00 : f32
      %22 = vector.broadcast %cst_18 : f32 to vector<1x4xf32>
      %23 = arith.divf %21, %22 : vector<1x4xf32>
      %24 = vector.broadcast %23 : vector<1x4xf32> to vector<2x4xf32>
      %25 = arith.subf %19, %24 : vector<2x4xf32>
      %26 = arith.mulf %25, %25 : vector<2x4xf32>
      %cst_19 = arith.constant dense<0.000000e+00> : vector<4xf32>
      %27 = vector.multi_reduction <add>, %26, %cst_19 [0] : vector<2x4xf32> to vector<4xf32>
      %28 = vector.shape_cast %27 : vector<4xf32> to vector<1x4xf32>
      %cst_20 = arith.constant 2.000000e+00 : f32
      %29 = vector.broadcast %cst_20 : f32 to vector<1x4xf32>
      %30 = arith.divf %28, %29 : vector<1x4xf32>
      %31 = vector.broadcast %23 : vector<1x4xf32> to vector<2x4xf32>
      %32 = arith.subf %19, %31 : vector<2x4xf32>
      %cst_21 = arith.constant 9.99999974E-6 : f32
      %33 = vector.broadcast %cst_21 : f32 to vector<1x4xf32>
      %34 = arith.addf %30, %33 : vector<1x4xf32>
      %35 = math.rsqrt %34 : vector<1x4xf32>
      %36 = vector.broadcast %35 : vector<1x4xf32> to vector<2x4xf32>
      %37 = arith.mulf %32, %36 : vector<2x4xf32>
      %c0_22 = arith.constant 0 : index
      %c0_23 = arith.constant 0 : index
      %38 = vector.load %arg4[%c0_22, %c0_23] : memref<1x4xf32, #tpu.memory_space<vmem>>, vector<1x4xf32>
      %39 = vector.broadcast %38 : vector<1x4xf32> to vector<2x4xf32>
      %40 = arith.mulf %37, %39 : vector<2x4xf32>
      %c0_24 = arith.constant 0 : index
      %c0_25 = arith.constant 0 : index
      %41 = vector.load %arg5[%c0_24, %c0_25] : memref<1x4xf32, #tpu.memory_space<vmem>>, vector<1x4xf32>
      %42 = vector.broadcast %41 : vector<1x4xf32> to vector<2x4xf32>
      %43 = arith.addf %40, %42 : vector<2x4xf32>
      %44 = arith.negf %43 : vector<2x4xf32>
      %45 = math.exp %44 : vector<2x4xf32>
      %cst_26 = arith.constant 1.000000e+00 : f32
      %46 = vector.broadcast %cst_26 : f32 to vector<2x4xf32>
      %47 = arith.addf %46, %45 : vector<2x4xf32>
      %48 = arith.divf %46, %47 : vector<2x4xf32>
      %c0_27 = arith.constant 0 : index
      %c0_28 = arith.constant 0 : index
      %49 = vector.load %arg6[%c0_27, %c0_28] : memref<2x4xf32, #tpu.memory_space<vmem>>, vector<2x4xf32>
      tpu.vector_store %arg6[%c0_27, %c0_28], %48 {strides = array<i32>} : memref<2x4xf32, #tpu.memory_space<vmem>>, vector<2x4xf32>,
    } else {
    }
    return
  }
  func.func @transform_0(%arg0: i32) -> (i32, i32, i32) {
    %c0_i32 = arith.constant 0 : i32
    %c0_i32_0 = arith.constant 0 : i32
    %c0_i32_1 = arith.constant 0 : i32
    return %c0_i32, %c0_i32_0, %arg0 : i32, i32, i32
  }
  func.func @transform_1(%arg0: i32) -> (i32, i32) {
    %c0_i32 = arith.constant 0 : i32
    %c0_i32_0 = arith.constant 0 : i32
    %c0_i32_1 = arith.constant 0 : i32
    return %c0_i32, %c0_i32_0 : i32, i32
  }
  func.func @transform_2(%arg0: i32) -> (i32, i32) {
    %c0_i32 = arith.constant 0 : i32
    %c0_i32_0 = arith.constant 0 : i32
    %c0_i32_1 = arith.constant 0 : i32
    return %c0_i32, %c0_i32_0 : i32, i32
  }
  func.func @transform_3(%arg0: i32) -> (i32, i32) {
    %c0_i32 = arith.constant 0 : i32
    %c0_i32_0 = arith.constant 0 : i32
    %c0_i32_1 = arith.constant 0 : i32
    return %c0_i32, %c0_i32_0 : i32, i32
  }
  func.func @transform_4(%arg0: i32) -> (i32, i32) {
    %c0_i32 = arith.constant 0 : i32
    %c0_i32_0 = arith.constant 0 : i32
    %c0_i32_1 = arith.constant 0 : i32
    return %c0_i32, %c0_i32_0 : i32, i32
  }
  func.func @transform_5(%arg0: i32) -> (i32, i32) {
    %c0_i32 = arith.constant 0 : i32
    %c0_i32_0 = arith.constant 0 : i32
    %c0_i32_1 = arith.constant 0 : i32
    return %c0_i32, %c0_i32_0 : i32, i32
  }
}

</mosaic_0001>

<llo_original>
// kernel: tpu_custom_call.1
$region0: #{tpu_custom_call.1}
  #allocation0 [shape = 'u32[]', space=smem, size = 0x4, offset = 0x4, fixed_abs, tag = 'smem constant byte address 0x4 - core index']
  #allocation1 [shape = 'u32[72,128]{1,0:T(1,128)}', space=vmem, size = 0x9000, scoped, tag = 'internal scratch']
  #allocation2 [shape = 'f32[2,4]{1,0:T(2,128)}', space=vmem, size = 0x400, scoped, tag = 'scratch operand']
  %s0 = inlined_call_operand.hbm [shape: f32[2,4,512], index: 0, kind: input, shape index: {}]
  %s1 = inlined_call_operand.hbm [shape: f32[4,4], index: 1, kind: input, shape index: {}]
  %s2 = inlined_call_operand.vmem [shape: f32[1,4], index: 2, kind: input, shape index: {}]
  %s3 = inlined_call_operand.vmem [shape: f32[1,4], index: 3, kind: input, shape index: {}]
  %s4 = inlined_call_operand.vmem [shape: f32[1,4], index: 4, kind: input, shape index: {}]
  %s5 = inlined_call_operand.hbm [shape: f32[2,4], index: 5, kind: output, shape index: {}]
  %s6 = sld [smem:[#allocation0]]
  $region46: #{tpu_custom_call.1} parent=0
    _
  %s8 = ssub.s32 1, %s6
  %s9 = scalar_select 0, %s8, %s6
  $region1: #{tpu_custom_call.1} parent=0
    #allocation3 [shape = 'u8[16384]{0}', space=vmem, size = 0x4000, scoped, tag = 'input window, operand 0, single buffered']
    #allocation4 [shape = 's32[1]{0}', space=sflag, size = 0x4, scoped, tag = 'scoped memory for tpu_custom_call.1']
    #allocation5 [shape = 's32[1]{0}', space=sflag, size = 0x4, scoped, tag = 'scoped memory for tpu_custom_call.1']
    #allocation6 [shape = 'u8[2048]{0}', space=vmem, size = 0x800, scoped, tag = 'input window, operand 1, single buffered']
    #allocation7 [shape = 's32[1]{0}', space=sflag, size = 0x4, scoped, tag = 'scoped memory for tpu_custom_call.1']
    #allocation8 [shape = 'u8[1024]{0}', space=vmem, size = 0x400, scoped, tag = 'output window, operand 0, single buffered']
    %10 = vsyncpa [#allocation4], 0
    %11 = vsyncpa [#allocation7], 0
    %12 = vsyncpa [#allocation5], 0
    // Predicated region
    $region2: #{tpu_custom_call.1} parent=1 // pred_check
      _
    $region3: #{tpu_custom_call.1} parent=1 // pred_check_branch
      %14 = sbr.rel (0) target = $region5
    $region4: #{tpu_custom_call.1} parent=1 // pred_region
      %16 = vsyncadd [#allocation4], 0
      %s17 = sshll.u32 %s0, 4
      %s18 = int_to_ptr.hbm [resolvable:$true] %s17
      %s19 = sshll.u32 [#allocation3], 4
      %s20 = int_to_ptr.vmem [resolvable:$true] %s19
      %25 = dma.hbm_to_vmem [thread:$0]  %s18, 512, %s20, [#allocation4], 256, 256, 16
    $region5: #{tpu_custom_call.1} parent=1 // pred_fallthru
      _
    // Predicated region
    $region6: #{tpu_custom_call.1} parent=1 // pred_check
      _
    $region7: #{tpu_custom_call.1} parent=1 // pred_check_branch
      %27 = sbr.rel (0) target = $region9
    $region8: #{tpu_custom_call.1} parent=1 // pred_region
      %29 = vsyncadd [#allocation7], 0
      %s31 = sshll.u32 %s1, 4
      %s32 = int_to_ptr.hbm [resolvable:$true] %s31
      %s33 = sshll.u32 [#allocation6], 4
      %s34 = int_to_ptr.vmem [resolvable:$true] %s33
      %36 = dma.hbm_to_vmem [thread:$0]  %s32, 64, %s34, [#allocation7]
    $region9: #{tpu_custom_call.1} parent=1 // pred_fallthru
      _
    // Predicated region
    $region10: #{tpu_custom_call.1} parent=1 // pred_check
      _
    $region11: #{tpu_custom_call.1} parent=1 // pred_check_branch
      %38 = sbr.rel (0) target = $region13
    $region12: #{tpu_custom_call.1} parent=1 // pred_region
      _
    $region13: #{tpu_custom_call.1} parent=1 // pred_fallthru
      _
    // Predicated region
    $region14: #{tpu_custom_call.1} parent=1 // pred_check
      _
    $region15: #{tpu_custom_call.1} parent=1 // pred_check_branch
      %40 = sbr.rel (0) target = $region17
    $region16: #{tpu_custom_call.1} parent=1 // pred_region
      _
    $region17: #{tpu_custom_call.1} parent=1 // pred_fallthru
      _
    // Predicated region
    $region18: #{tpu_custom_call.1} parent=1 // pred_check
      _
    $region19: #{tpu_custom_call.1} parent=1 // pred_check_branch
      %42 = sbr.rel (0) target = $region21
    $region20: #{tpu_custom_call.1} parent=1 // pred_region
      _
    $region21: #{tpu_custom_call.1} parent=1 // pred_fallthru
      _
    // Predicated region
    $region22: #{tpu_custom_call.1} parent=1 // pred_check
      _
    $region23: #{tpu_custom_call.1} parent=1 // pred_check_branch
      %44 = sbr.rel (0) target = $region25
    $region24: #{tpu_custom_call.1} parent=1 // pred_region
      %46 = dma.done [#allocation4], 512
    $region25: #{tpu_custom_call.1} parent=1 // pred_fallthru
      _
    // Predicated region
    $region26: #{tpu_custom_call.1} parent=1 // pred_check
      _
    $region27: #{tpu_custom_call.1} parent=1 // pred_check_branch
      %48 = sbr.rel (0) target = $region29
    $region28: #{tpu_custom_call.1} parent=1 // pred_region
      %50 = dma.done [#allocation7], 64
    $region29: #{tpu_custom_call.1} parent=1 // pred_fallthru
      _
    %p51 = scmp.eq.s32.totalorder 0, 0
    // Predicated region
    $region30: #{tpu_custom_call.1} parent=1 // pred_check
      %p52 = pneg %p51
    $region31: #{tpu_custom_call.1} parent=1 // pred_check_branch
      %54 = sbr.rel (%p52) target = $region33
    $region32: #{tpu_custom_call.1} parent=1 // pred_region
      %vm55 = vcmask 25600
      %56 = vst.msk [vmem:[#allocation2] sm:$0x3] %vm55, 0.0
    $region33: #{tpu_custom_call.1} parent=1 // pred_fallthru
      _
    %v57 = vld [vmem:[#allocation2] sm:$0x3]
    %v58 = vld [vmem:[#allocation3] sm:$0xff]
    %v59 = vld [vmem:[#allocation3 + $0x8] sm:$0xff]
    %v60 = vld [vmem:[#allocation3 + $0x10] sm:$0xff]
    %v61 = vld [vmem:[#allocation3 + $0x18] sm:$0xff]
    %66 = vst [vmem:[#allocation1] ss:$2 sm:$0xff] %v58
    %s67 = scalar_lea.vmem [#allocation1], 16
    %68 = vst [vmem:[%s67] ss:$2 sm:$0xff] %v59
    %v69 = vld.sshfl [vmem:[#allocation1] sm:$0xff pattern:$0x75316420]
    %v70 = vld.sshfl [vmem:[#allocation1 + $0x8] sm:$0xff pattern:$0x75316420]
    %v71 = vld.sshfl [vmem:[#allocation1 + $0x10] sm:$0xff pattern:$0x75316420]
    %v72 = vld.sshfl [vmem:[#allocation1 + $0x18] sm:$0xff pattern:$0x75316420]
    %s73 = scalar_lea.vmem [#allocation1], 32
    %74 = vst [vmem:[%s73] ss:$2 sm:$0xff] %v60
    %s75 = scalar_lea.vmem [#allocation1], 48
    %76 = vst [vmem:[%s75] ss:$2 sm:$0xff] %v61
    %v77 = vld.sshfl [vmem:[#allocation1 + $0x20] sm:$0xff pattern:$0x75316420]
    %v78 = vld.sshfl [vmem:[#allocation1 + $0x28] sm:$0xff pattern:$0x75316420]
    %v79 = vld.sshfl [vmem:[#allocation1 + $0x30] sm:$0xff pattern:$0x75316420]
    %v80 = vld.sshfl [vmem:[#allocation1 + $0x38] sm:$0xff pattern:$0x75316420]
    %vm89 = vcmask 1043456
    %v90 = vsel %vm89, %v69, 0.0
    %v91 = vsel %vm89, %v70, 0.0
    %v92 = vadd.f32 %v90, %v91
    %v93 = vsel %vm89, %v71, 0.0
    %v94 = vadd.f32 %v92, %v93
    %v95 = vsel %vm89, %v72, 0.0
    %v96 = vadd.f32 %v94, %v95
    %97 = vadd.xlane.f32.xlu0 %v96
    %v98 = vpop.xlane.xlu0 %97
    %v99 = vsel %vm89, %v77, 0.0
    %v100 = vsel %vm89, %v78, 0.0
    %v101 = vadd.f32 %v99, %v100
    %v102 = vsel %vm89, %v79, 0.0
    %v103 = vadd.f32 %v101, %v102
    %v104 = vsel %vm89, %v80, 0.0
    %v105 = vadd.f32 %v103, %v104
    %106 = vadd.xlane.f32.xlu0 %v105
    %v107 = vpop.xlane.xlu0 %106
    %v110 = vlaneseq
    %v111 = vand.u32 %v110, 127
    %v112 = vperm.slane %v98, %v111
    %v113 = vperm.slane %v107, %v111
    %vm114 = vcmask 1041409
    %v115 = vsel %vm114, %v113, %v112
    %v117 = vadd.f32 %v57, %v115
    %vm118 = vcmask 25600
    %119 = vst.msk [vmem:[#allocation2] sm:$0x3] %vm118, %v117
    // Predicated region
    $region34: #{tpu_custom_call.1} parent=1 // pred_check
      %p120 = pneg %p51
    $region35: #{tpu_custom_call.1} parent=1 // pred_check_branch
      %122 = sbr.rel (%p120) target = $region37
    $region36: #{tpu_custom_call.1} parent=1 // pred_region
      %v123 = vld [vmem:[#allocation2] sm:$0x3]
      %v124 = vmul.f32 %v123, 0.001953125
      %v125 = vld [vmem:[#allocation6] sm:$0xf]
      %v126 = vld [vmem:[%s2] sm:$0x1]
      %v128 = vperm.slane %v126, 0
      %vm130 = vcmask 31744
      %v132 = vsel %vm130, %v124, 0
      %v135 = vsel %vm130, %v125, 0
      %137 = vmatpush.xpose.msra.mxu0 0.0
      %138 = vmatpush.xpose.msra.mxu0 0.0
      %139 = vmatpush.xpose.msra.mxu0 0.0
      %140 = vmatpush.xpose.msra.mxu0 0.0
      %141 = vmatpush.xpose.msra.mxu0 0.0
      %142 = vmatpush.xpose.msra.mxu0 0.0
      %143 = vmatpush.xpose.msra.mxu0 0.0
      %144 = vmatpush.xpose.msra.mxu0 0.0
      %145 = vmatpush.xpose.msra.mxu0 0.0
      %146 = vmatpush.xpose.msra.mxu0 0.0
      %147 = vmatpush.xpose.msra.mxu0 0.0
      %148 = vmatpush.xpose.msra.mxu0 0.0
      %149 = vmatpush.xpose.msra.mxu0 0.0
      %150 = vmatpush.xpose.msra.mxu0 0.0
      %151 = vmatpush.xpose.msra.mxu0 0.0
      %152 = vmatpush.xpose.msra.mxu0 %v135
      %153 = vmatmul.f32.gmra.mxu0 %v132
      %v154 = vpop.f32.mrf.mxu0
      %v155 = vadd.f32 %v128, %v154
      %156 = vdwg.mxu0
      %v157 = vsel %vm118, %v155, 0.0
      %v158 = vrot.slane %v157, 4
      %v159 = vadd.f32 %v157, %v158
      %v160 = vrot.slane %v159, 2
      %v161 = vadd.f32 %v159, %v160
      %v162 = vrot.slane %v161, 1
      %v163 = vadd.f32 %v161, %v162
      %v164 = vrcp.pop 2.0
      %v165 = vmul.f32 2.0, %v164
      %v166 = vsub.f32 1.0, %v165
      %v167 = vmul.f32 %v164, %v166
      %v168 = vadd.f32 %v164, %v167
      %vm169 = vweird.f32 %v164
      %v170 = vsel %vm169, %v164, %v168
      %v171 = vmul.f32 %v163, %v170
      %v172 = vsub.f32 %v155, %v171
      %v173 = vmul.f32 %v172, %v172
      %v174 = vsel %vm118, %v173, 0.0
      %v175 = vrot.slane %v174, 4
      %v176 = vadd.f32 %v174, %v175
      %v177 = vrot.slane %v176, 2
      %v178 = vadd.f32 %v176, %v177
      %v179 = vrot.slane %v178, 1
      %v180 = vadd.f32 %v178, %v179
      %v181 = vmul.f32 %v180, %v170
      %v182 = vadd.f32 %v181, 1e-05
      %v183 = vrsqrt.pop %v182
      %v184 = vmul.f32 %v183, %v182
      %v185 = vmul.f32 %v184, %v183
      %v186 = vmul.f32 0.5, %v185
      %v187 = vsub.f32 1.5, %v186
      %v188 = vmul.f32 %v183, %v187
      %vm189 = vweird.f32 %v182
      %vm190 = vweird.f32 %v183
      %vm191 = vmor %vm189, %vm190
      %v192 = vsel %vm191, %v183, %v188
      %v193 = vmul.f32 %v172, %v192
      %v194 = vld [vmem:[%s3] sm:$0x1]
      %v196 = vperm.slane %v194, 0
      %v198 = vmul.f32 %v193, %v196
      %v199 = vld [vmem:[%s4] sm:$0x1]
      %v201 = vperm.slane %v199, 0
      %v203 = vadd.f32 %v198, %v201
      %v204 = vxor.u32 %v203, 2147483648
      %v205 = vmul.f32 %v204, 1.442695
      %v206 = vpow.pop %v205
      %v207 = vadd.f32 %v206, 1.0
      %v208 = vrcp.pop %v207
      %v209 = vmul.f32 %v207, %v208
      %v210 = vsub.f32 1.0, %v209
      %v211 = vmul.f32 %v208, %v210
      %v212 = vadd.f32 %v208, %v211
      %vm213 = vweird.f32 %v207
      %vm214 = vweird.f32 %v208
      %vm215 = vmor %vm213, %vm214
      %v216 = vsel %vm215, %v208, %v212
      %v217 = vand.u32 2147483647, %v207
      %vm218 = vcmp.eq.f32.partialorder %v217, 8.507059e+37
      %v219 = vand.u32 %v207, 2147483648
      %v220 = vor.u32 1.1754944e-38, %v219
      %v221 = vsel %vm218, %v220, %v216
      %v222 = vmul.f32 1.0, %v221
      %223 = vst.msk [vmem:[#allocation8] sm:$0x3] %vm118, %v222
    $region37: #{tpu_custom_call.1} parent=1 // pred_fallthru
      _
    // Predicated region
    $region38: #{tpu_custom_call.1} parent=1 // pred_check
      _
    $region39: #{tpu_custom_call.1} parent=1 // pred_check_branch
      %225 = sbr.rel (0) target = $region41
    $region40: #{tpu_custom_call.1} parent=1 // pred_region
      %227 = vsyncadd [#allocation5], 0
      %s229 = sshll.u32 [#allocation8], 4
      %s230 = int_to_ptr.vmem [resolvable:$true] %s229
      %s231 = sshll.u32 %s5, 4
      %s232 = int_to_ptr.hbm [resolvable:$true] %s231
      %234 = dma.vmem_to_hbm [thread:$0]  %s230, 32, %s232, [#allocation5]
    $region41: #{tpu_custom_call.1} parent=1 // pred_fallthru
      _
    // Predicated region
    $region42: #{tpu_custom_call.1} parent=1 // pred_check
      _
    $region43: #{tpu_custom_call.1} parent=1 // pred_check_branch
      %236 = sbr.rel (0) target = $region45
    $region44: #{tpu_custom_call.1} parent=1 // pred_region
      %238 = dma.done [#allocation5], 32
    $region45: #{tpu_custom_call.1} parent=1 // pred_fallthru
      _
    %239 = vsyncpa [#allocation4], 1
    %240 = vsyncpa [#allocation7], 1
    %241 = vsyncpa [#allocation5], 1

</llo_original>
